<compile_context>
chip_gen: v7x
topology: tpu7x:2x2x1
jax: 0.10.0
libtpu: 0.0.40
codegen_flags: <defaults>
</compile_context>

<pallas_src>
import jax
import jax.numpy as jnp
from jax.experimental import pallas as pl
from jax.experimental.pallas import tpu as pltpu


# --------------------------------------------------------------------------- #
# helpers
# --------------------------------------------------------------------------- #
def _round_up(x, m):
    return ((x + m - 1) // m) * m


# VMEM planning: keep the double-buffered working set under a budget that fits every
# generation (v7x: 64 MiB physical / 32 MiB default-scoped; v5e/v6e: 128 MiB physical).
_VMEM_WORKING_SET_BUDGET = 40 * 1024 * 1024
_VMEM_LIMIT_BYTES = 48 * 1024 * 1024


def _plan_tiles(n_pad, fm_pad, in_bytes, out_bytes, budget=_VMEM_WORKING_SET_BUDGET):
    """Pick (k_axis, tm, tn, tk) so the double-buffered working set fits `budget`."""
    tn_cands = [fm_pad] + [t for t in (2048, 1024, 512, 256, 128) if t < fm_pad]
    tn_cands = [t for t in tn_cands if fm_pad % t == 0]

    # Preferred: full-K blocks (RHS resident in VMEM, single pass over the LHS).
    for tn in tn_cands:                       # maximize tn first (operator residency)
        for tm in (512, 256, 128):
            ws = (2 * tm * n_pad * in_bytes        # LHS, double-buffered
                  + 2 * n_pad * tn * in_bytes      # RHS, double-buffered
                  + 2 * tm * tn * out_bytes)       # output, double-buffered
            if ws <= budget:
                return {"k_axis": False, "tm": tm, "tn": tn, "tk": n_pad}

    # Fallback for very large sl_len: keep a k grid axis.
    for tk in (4096, 2048, 1024, 512, 256, 128):
        if n_pad % tk:
            continue
        for tn in (512, 256, 128):
            if fm_pad % tn:
                continue
            for tm in (512, 256, 128):
                ws = 2 * tm * tk * in_bytes + 2 * tk * tn * in_bytes + 2 * tm * tn * 4
                if ws <= budget:
                    return {"k_axis": True, "tm": tm, "tn": tn, "tk": tk}
    return {"k_axis": True, "tm": 128, "tn": 128, "tk": 128}


# --------------------------------------------------------------------------- #
# Pallas kernels
# --------------------------------------------------------------------------- #
def _fullk_kernel(f_ref, t_ref, o_ref):
    # Single full-K MXU matmul per block: no k axis, no accumulator scratch,
    # no pl.when init/finalize.
    o_ref[...] = jnp.dot(f_ref[...], t_ref[...],
                         preferred_element_type=jnp.float32).astype(o_ref.dtype)


def _nsgt_matmul_fullk(f_rows, T_par, *, tm, tn, out_dtype):
    """f_rows: (2, R, K) bf16 ; T_par: (2, K, Ncol) bf16 ; returns (2, R, Ncol)."""
    P, R, K = f_rows.shape
    P2, K2, Ncol = T_par.shape
    assert P == P2 == 2 and K == K2
    assert R % tm == 0 and Ncol % tn == 0

    # Row-tile axis innermost + RHS index_map independent of it: each parity's
    # operator slab is fetched once and stays VMEM-resident across all row tiles.
    grid = (P, Ncol // tn, R // tm)
    flops = 2 * P * R * K * Ncol
    bytes_accessed = (P * R * K * f_rows.dtype.itemsize * (Ncol // tn)   # LHS stream
                      + P * K * Ncol * T_par.dtype.itemsize              # RHS once/parity
                      + P * R * Ncol * jnp.dtype(out_dtype).itemsize)    # writeback

    return pl.pallas_call(
        _fullk_kernel,
        out_shape=jax.ShapeDtypeStruct((P, R, Ncol), out_dtype),
        grid_spec=pltpu.PrefetchScalarGridSpec(
            num_scalar_prefetch=0,
            grid=grid,
            in_specs=[
                pl.BlockSpec((None, tm, K), lambda p, j, i: (p, i, 0)),
                pl.BlockSpec((None, K, tn), lambda p, j, i: (p, 0, j)),
            ],
            out_specs=pl.BlockSpec((None, tm, tn), lambda p, j, i: (p, i, j)),
        ),
        compiler_params=pltpu.CompilerParams(
            dimension_semantics=("parallel", "parallel", "parallel"),
            vmem_limit_bytes=_VMEM_LIMIT_BYTES),
        cost_estimate=pl.CostEstimate(flops=flops, transcendentals=0,
                                      bytes_accessed=bytes_accessed),
    )(f_rows, T_par)


def _ktiled_kernel(f_ref, t_ref, o_ref):
    # Output block index is constant across the k axis -> it stays VMEM-resident;
    # accumulate directly into it (no separate scratch, no finalize copy).
    @pl.when(pl.program_id(3) == 0)
    def _init():
        o_ref[...] = jnp.zeros_like(o_ref)

    o_ref[...] += jnp.dot(f_ref[...], t_ref[...], preferred_element_type=jnp.float32)


def _nsgt_matmul_ktiled(f_rows, T_par, *, tm, tn, tk):
    P, R, K = f_rows.shape
    _, _, Ncol = T_par.shape
    assert R % tm == 0 and Ncol % tn == 0 and K % tk == 0
    grid = (P, R // tm, Ncol // tn, K // tk)
    flops = 2 * P * R * K * Ncol
    bytes_accessed = (P * R * K * f_rows.dtype.itemsize * (Ncol // tn)
                      + P * K * Ncol * T_par.dtype.itemsize * (R // tm)
                      + P * R * Ncol * 4)
    return pl.pallas_call(
        _ktiled_kernel,
        out_shape=jax.ShapeDtypeStruct((P, R, Ncol), jnp.float32),
        grid_spec=pltpu.PrefetchScalarGridSpec(
            num_scalar_prefetch=0,
            grid=grid,
            in_specs=[
                pl.BlockSpec((None, tm, tk), lambda p, i, j, k: (p, i, k)),
                pl.BlockSpec((None, tk, tn), lambda p, i, j, k: (p, k, j)),
            ],
            out_specs=pl.BlockSpec((None, tm, tn), lambda p, i, j, k: (p, i, j)),
        ),
        compiler_params=pltpu.CompilerParams(
            dimension_semantics=("parallel", "parallel", "parallel", "arbitrary"),
            vmem_limit_bytes=_VMEM_LIMIT_BYTES),
        cost_estimate=pl.CostEstimate(flops=flops, transcendentals=0,
                                      bytes_accessed=bytes_accessed),
    )(f_rows, T_par)


# --------------------------------------------------------------------------- #
# Module wrapper
# --------------------------------------------------------------------------- #
class NSGTSlicedPallas:
    """Pallas version of NSGT_sliced (analysis / forward direction)."""

    def __init__(self, sl_len=64, tr_area=8, buckets=((8, 16), (4, 32)), seed=0,
                 compute_dtype=jnp.bfloat16, out_dtype=jnp.float32):
        assert sl_len > 0 and sl_len % 4 == 0
        assert tr_area >= 0 and tr_area % 2 == 0
        assert sl_len > tr_area * 2
        self.sl_len = sl_len
        self.tr_area = tr_area
        self.buckets = list(buckets)          # (fbins F, coef_len M) per bucket
        self.compute_dtype = compute_dtype
        self.out_dtype = out_dtype            # bf16 halves the dominant writeback stream
        for _, M in self.buckets:
            assert M % 4 == 0                 # arrange() needs clean M//4 splits

        # TODO(synk): nsgfwin/calcwinrange/nsgtf_sl build a complex FFT frame; a
        # deterministic synthetic *real* linear operator (sl_len, F*M) per bucket
        # stands in for that hot path (a complex frame would split into re/im matmuls
        # and double Ncol -- redo the VMEM tile budget for that case).
        keys = jax.random.split(jax.random.PRNGKey(seed), len(self.buckets))
        self.T = [jax.random.normal(k, (sl_len, F * M), jnp.float32) / sl_len
                  for k, (F, M) in zip(keys, self.buckets)]

        # ---- Fuse arrange(cseq, fwd=True) into the operator ------------------
        # fwd arrange: out[..., j] = x[..., (j + mid) % M], mid = 3M/4 for even
        # slices, M/4 for odd slices ==> compile-time column permutation per parity.
        t_even, t_odd = [], []
        for (F, M), T in zip(self.buckets, self.T):
            T3 = T.reshape(sl_len, F, M)
            t_even.append(jnp.roll(T3, shift=-(3 * M // 4), axis=-1).reshape(sl_len, F * M))
            t_odd.append(jnp.roll(T3, shift=-(M // 4), axis=-1).reshape(sl_len, F * M))
        T_even = jnp.concatenate(t_even, axis=-1)      # one wide operator, all buckets
        T_odd = jnp.concatenate(t_odd, axis=-1)

        self.fm_total = sum(F * M for F, M in self.buckets)
        self.fm_pad = _round_up(self.fm_total, 128)    # lane-dense output columns
        self.n_pad = _round_up(sl_len, 128)
        T_par = jnp.stack([T_even, T_odd], axis=0)     # (2, N, FM_total)
        T_par = jnp.pad(T_par, ((0, 0), (0, self.n_pad - sl_len),
                                (0, self.fm_pad - self.fm_total)))
        self.T_par = T_par.astype(compute_dtype)       # bf16 MXU inputs, f32 accumulate

        plan = _plan_tiles(self.n_pad, self.fm_pad,
                           in_bytes=jnp.dtype(compute_dtype).itemsize,
                           out_bytes=jnp.dtype(out_dtype).itemsize)
        self.k_axis = plan["k_axis"]
        self.tm_pref = plan["tm"]
        self.tn = plan["tn"]
        self.tk = plan["tk"]

    # ------------------------------------------------------------------ slicing
    def _slicing_parity(self, sig):
        # TODO(synk): the original slicing() applies Tukey transition windows over
        # tr_area and a half-slice delay; rectangular 50%-overlap slicing is used.
        C, L = sig.shape
        hop = self.sl_len // 2
        S = max(1, L // hop)
        S_pad = S + (S % 2)
        Sh = S_pad // 2
        pad_to = (S_pad + 1) * hop
        padded = jnp.pad(sig, ((0, 0), (0, max(0, pad_to - L))))
        # Even slices (0,2,4,...) tile [0, Sh*sl_len) contiguously; odd slices tile
        # [hop, hop + Sh*sl_len): two reshaped views -> signal read once, no gather,
        # no transpose (rows stay channel-major).
        even = padded[:, :Sh * self.sl_len].reshape(C, Sh, self.sl_len)
        odd = padded[:, hop:hop + Sh * self.sl_len].reshape(C, Sh, self.sl_len)
        f_par = jnp.stack([even, odd], axis=0)          # (2, C, Sh, N)
        return f_par, S, S_pad

    # ------------------------------------------------------------------ forward
    def forward(self, sig):
        f_par, S, S_pad = self._slicing_parity(sig)     # (2, C, Sh, N) parity-major
        _, C, Sh, N = f_par.shape
        rows = C * Sh                                    # matmul rows per parity

        # Row tile: multiple of 16 minimum (bf16 native sublane pack); rows >= 128
        # keeps the MXU full -- batch longer recordings per call when possible.
        if rows >= self.tm_pref:
            tm = self.tm_pref
        elif rows >= 128:
            tm = 128
        else:
            tm = _round_up(rows, 16)
        rows_pad = _round_up(rows, tm)

        f_rows = f_par.reshape(2, rows, N)               # free reshape (leading dims)
        f_rows = jnp.pad(f_rows, ((0, 0), (0, rows_pad - rows), (0, self.n_pad - N)))
        f_rows = f_rows.astype(self.compute_dtype)

        if not self.k_axis:
            out = _nsgt_matmul_fullk(f_rows, self.T_par, tm=tm, tn=self.tn,
                                     out_dtype=self.out_dtype)
        else:
            out = _nsgt_matmul_ktiled(f_rows, self.T_par, tm=tm, tn=self.tn, tk=self.tk)
            out = out.astype(self.out_dtype)

        # Bucket split; the parity de-interleave (slice index = 2*j + p) is folded
        # into the per-bucket reshape/transpose copy we have to pay anyway.
        c = out[:, :rows, :].reshape(2, C, Sh, self.fm_pad)
        cseq, off = [], 0
        for F, M in self.buckets:
            ck = c[..., off:off + F * M].reshape(2, C, Sh, F, M)
            ck = ck.transpose(2, 0, 1, 3, 4).reshape(S_pad, C, F, M)[:S]
            cseq.append(ck)
            off += F * M
        return cseq


# --------------------------------------------------------------------------- #
# Pure-JAX reference (un-fused: loop slicing, matmul, then arrange)
# --------------------------------------------------------------------------- #
def _reference_forward(model, sig):
    C, L = sig.shape
    hop = model.sl_len // 2
    S = max(1, L // hop)
    padded = jnp.pad(sig, ((0, 0), (0, max(0, S * hop + hop - L))))
    f = jnp.stack([padded[:, i * hop:i * hop + model.sl_len] for i in range(S)], axis=0)
    fb = f.reshape(S * C, model.sl_len).astype(model.compute_dtype)
    outs = []
    for (F, M), T in zip(model.buckets, model.T):
        Tb = T.astype(model.compute_dtype)
        c = jnp.dot(fb, Tb, preferred_element_type=jnp.float32).reshape(S, C, F, M)
        odd_mid, even_mid = M // 4, 3 * M // 4
        c = c.at[1::2].set(
            jnp.concatenate([c[1::2, ..., odd_mid:], c[1::2, ..., :odd_mid]], axis=-1))
        c = c.at[0::2].set(
            jnp.concatenate([c[0::2, ..., even_mid:], c[0::2, ..., :even_mid]], axis=-1))
        outs.append(c)
    return outs


if __name__ == "__main__":
    key = jax.random.PRNGKey(0)
    C, L = 2, 256                                    # stereo signal, 256 samples
    sig = jax.random.normal(key, (C, L), jnp.float32)

    model = NSGTSlicedPallas(sl_len=64, tr_area=8, buckets=((8, 16), (4, 32)), seed=0)

    cseq = model.forward(sig)                        # [(8,2,8,16), (8,2,4,32)]
    cseq = [jax.block_until_ready(c) for c in cseq]

    ref = _reference_forward(model, sig)
    for c, r in zip(cseq, ref):
        assert c.shape == r.shape, (c.shape, r.shape)
        err = float(jnp.max(jnp.abs(c.astype(jnp.float32) - r)))
        assert jnp.allclose(c.astype(jnp.float32), r, atol=1e-2, rtol=1e-2), err

    print("KERNEL_OK")
</pallas_src>

<mosaic_0001>
module attributes {stable_mosaic.version = 11 : i64} {
  func.func @_fullk_kernel(%arg0: i32, %arg1: i32, %arg2: i32, %arg3: memref<1x16x128xbf16, #tpu.memory_space<vmem>>, %arg4: memref<1x128x256xbf16, #tpu.memory_space<vmem>>, %arg5: memref<1x16x256xf32, #tpu.memory_space<vmem>>) attributes {dimension_semantics = [#tpu.dimension_semantics<parallel>, #tpu.dimension_semantics<parallel>, #tpu.dimension_semantics<parallel>], iteration_bounds = array<i64: 2, 1, 1>, scalar_prefetch = 0 : i64, scratch_operands = 0 : i64, tpu.core_type = #tpu.core_type<tc>, window_params = [{transform_indices = @transform_0, window_bounds = array<i64: 1, 16, 128>}, {transform_indices = @transform_1, window_bounds = array<i64: 1, 128, 256>}, {transform_indices = @transform_2, window_bounds = array<i64: 1, 16, 256>}]} {
    %c0 = arith.constant 0 : index
    %c0_0 = arith.constant 0 : index
    %c0_1 = arith.constant 0 : index
    %0 = vector.load %arg3[%c0, %c0_0, %c0_1] : memref<1x16x128xbf16, #tpu.memory_space<vmem>>, vector<1x16x128xbf16>
    %1 = vector.shape_cast %0 : vector<1x16x128xbf16> to vector<16x128xbf16>
    %c0_2 = arith.constant 0 : index
    %c0_3 = arith.constant 0 : index
    %c0_4 = arith.constant 0 : index
    %2 = vector.load %arg4[%c0_2, %c0_3, %c0_4] : memref<1x128x256xbf16, #tpu.memory_space<vmem>>, vector<1x128x256xbf16>
    %3 = vector.shape_cast %2 : vector<1x128x256xbf16> to vector<128x256xbf16>
    %cst = arith.constant dense<0.000000e+00> : vector<16x256xf32>
    %4 = tpu.matmul %1, %3, %cst {dimension_numbers = #tpu.dot_dimension_numbers<[1], [0], [0], [1], [0, 0, 1, 1], [], []>} : vector<16x128xbf16>, vector<128x256xbf16>, vector<16x256xf32> -> vector<16x256xf32>
    %c0_5 = arith.constant 0 : index
    %c0_6 = arith.constant 0 : index
    %c0_7 = arith.constant 0 : index
    %5 = vector.load %arg5[%c0_5, %c0_6, %c0_7] : memref<1x16x256xf32, #tpu.memory_space<vmem>>, vector<1x16x256xf32>
    %6 = vector.shape_cast %5 : vector<1x16x256xf32> to vector<16x256xf32>
    %7 = vector.shape_cast %4 : vector<16x256xf32> to vector<1x16x256xf32>
    tpu.vector_store %arg5[%c0_5, %c0_6, %c0_7], %7 {strides = array<i32>} : memref<1x16x256xf32, #tpu.memory_space<vmem>>, vector<1x16x256xf32>,
    return
  }
  func.func @transform_0(%arg0: i32, %arg1: i32, %arg2: i32) -> (i32, i32, i32) {
    %c0_i32 = arith.constant 0 : i32
    %c0_i32_0 = arith.constant 0 : i32
    return %arg0, %arg2, %c0_i32 : i32, i32, i32
  }
  func.func @transform_1(%arg0: i32, %arg1: i32, %arg2: i32) -> (i32, i32, i32) {
    %c0_i32 = arith.constant 0 : i32
    %c0_i32_0 = arith.constant 0 : i32
    return %arg0, %c0_i32, %arg1 : i32, i32, i32
  }
  func.func @transform_2(%arg0: i32, %arg1: i32, %arg2: i32) -> (i32, i32, i32) {
    %c0_i32 = arith.constant 0 : i32
    return %arg0, %arg2, %arg1 : i32, i32, i32
  }
}

</mosaic_0001>

<llo_original>
// kernel: tpu_custom_call.1
$region0: #{tpu_custom_call.1}
  #allocation0 [shape = 'u32[]', space=smem, size = 0x4, offset = 0x4, fixed_abs, tag = 'smem constant byte address 0x4 - core index']
  #allocation1 [shape = 'u32[144,128]{1,0:T(1,128)}', space=vmem, size = 0x12000, scoped, tag = 'internal scratch']
  %s0 = inlined_call_operand.hbm [shape: bf16[2,16,128], index: 0, kind: input, shape index: {}]
  %s1 = inlined_call_operand.hbm [shape: bf16[2,128,256], index: 1, kind: input, shape index: {}]
  %s2 = inlined_call_operand.hbm [shape: f32[2,16,256], index: 2, kind: output, shape index: {}]
  %s3 = sld [smem:[#allocation0]]
  $region49: #{tpu_custom_call.1} parent=0
    _
  %s5 = ssub.s32 1, %s3
  %s6 = scalar_select 0, %s5, %s3
  $region1: #{tpu_custom_call.1} parent=0
    #allocation2 [shape = 'u8[8192]{0}', space=vmem, size = 0x2000, scoped, tag = 'input window, operand 0']
    #allocation3 [shape = 's32[2]{0}', space=sflag, size = 0x8, scoped, tag = 'scoped memory for tpu_custom_call.1']
    #allocation4 [shape = 's32[2]{0}', space=sflag, size = 0x8, scoped, tag = 'scoped memory for tpu_custom_call.1']
    #allocation5 [shape = 'u8[131072]{0}', space=vmem, size = 0x20000, scoped, tag = 'input window, operand 1']
    #allocation6 [shape = 's32[2]{0}', space=sflag, size = 0x8, scoped, tag = 'scoped memory for tpu_custom_call.1']
    #allocation7 [shape = 'u8[32768]{0}', space=vmem, size = 0x8000, scoped, tag = 'output window, operand 0']
    %7 = vsyncpa [#allocation3], 0
    %s8 = scalar_lea.sflag [#allocation3], 1
    %9 = vsyncpa %s8, 0
    %10 = vsyncpa [#allocation6], 0
    %s11 = scalar_lea.sflag [#allocation6], 1
    %12 = vsyncpa %s11, 0
    %13 = vsyncpa [#allocation4], 0
    %s14 = scalar_lea.sflag [#allocation4], 1
    %15 = vsyncpa %s14, 0
    loop: start=0, step=1, limit=4
    $region2: #{tpu_custom_call.1} parent=1 // loop_pre_header
      _
    $region3: #{tpu_custom_call.1} parent=1 // loop_header
      %s17 = sphi 0, %s21
      %p18 = scmp.ge.s32.totalorder %s17, 4
      %s24 = sphi 0, %s43
      %s25 = sphi 0, %s39
      %s26 = sphi 0, %s35
      %s27 = sphi 0, %s24
      %s28 = sphi 0, %s25
      %s29 = sphi 0, %s26
      %s30 = sphi 0, %s27
      %s31 = sphi 0, %s28
      %s32 = sphi 0, %s29
      %s48 = sphi 0, %s50
      %s51 = sphi 0, %s48
      %s52 = sphi 0, %s51
      %s68 = sphi 0, %s52
      %s76 = sphi 0, %s78
      %s79 = sphi 0, %s76
      %s80 = sphi 0, %s79
      %s96 = sphi 0, %s80
      %s106 = sphi 0, %s108
      %s109 = sphi 0, %s106
      %s110 = sphi 0, %s109
      %s126 = sphi 0, %s110
    $region4: #{tpu_custom_call.1} parent=1 // loop_header_branch
      %20 = sbr.rel (%p18) target = $region8
    $region5: #{tpu_custom_call.1} parent=1 // loop_body
      %s22 = ssub.s32 %s17, 1
      %s23 = ssub.s32 %s17, 2
      %s33 = sadd.s32 1, %s26
      %p34 = scmp.ge.s32.totalorder %s33, 1
      %s35 = scalar_select %p34, 0, %s33
      %s36 = sadd.s32 1, %s25
      %s37 = scalar_select %p34, %s36, %s25
      %p38 = scmp.ge.s32.totalorder %s37, 1
      %s39 = scalar_select %p38, 0, %s37
      %s40 = sadd.s32 1, %s24
      %s41 = scalar_select %p38, %s40, %s24
      %p42 = scmp.ge.s32.totalorder %s41, 2
      %s43 = scalar_select %p42, 0, %s41
      %s44 = ssub.s32 %s24, %s43
      %s45 = ssub.s32 %s26, %s35
      %s46 = sor.u32 %s44, %s45
      %p47 = scmp.eq.s32.totalorder %s46, 0
      %s49 = sadd.s32 %s48, 1
      %s50 = scalar_select %p47, %s48, %s49
      %p53 = pneg %p47
      %p54 = scmp.eq.s32.totalorder %s17, 1
      %p55 = por %p53, %p54
      %p56 = scmp.ne.s32.totalorder %s48, %s51
      %p57 = scmp.eq.s32.totalorder %s17, 0
      %p58 = por %p56, %p57
      %p59 = scmp.ne.s32.totalorder %s48, %s51
      %p60 = scmp.eq.s32.totalorder %s22, 1
      %p61 = por %p59, %p60
      %p62 = scmp.ne.s32.totalorder %s51, %s52
      %p63 = scmp.eq.s32.totalorder %s22, 0
      %p64 = por %p62, %p63
      %p65 = scmp.ne.s32.totalorder %s51, %s52
      %p66 = scmp.eq.s32.totalorder %s23, 1
      %p67 = por %p65, %p66
      %p69 = scmp.ne.s32.totalorder %s52, %s68
      %p70 = scmp.eq.s32.totalorder %s23, 0
      %p71 = por %p69, %p70
      %s72 = ssub.s32 %s24, %s43
      %s73 = ssub.s32 %s25, %s39
      %s74 = sor.u32 %s72, %s73
      %p75 = scmp.eq.s32.totalorder %s74, 0
      %s77 = sadd.s32 %s76, 1
      %s78 = scalar_select %p75, %s76, %s77
      %p81 = pneg %p75
      %p82 = scmp.eq.s32.totalorder %s17, 1
      %p83 = por %p81, %p82
      %p84 = scmp.ne.s32.totalorder %s76, %s79
      %p85 = scmp.eq.s32.totalorder %s17, 0
      %p86 = por %p84, %p85
      %p87 = scmp.ne.s32.totalorder %s76, %s79
      %p88 = scmp.eq.s32.totalorder %s22, 1
      %p89 = por %p87, %p88
      %p90 = scmp.ne.s32.totalorder %s79, %s80
      %p91 = scmp.eq.s32.totalorder %s22, 0
      %p92 = por %p90, %p91
      %p93 = scmp.ne.s32.totalorder %s79, %s80
      %p94 = scmp.eq.s32.totalorder %s23, 1
      %p95 = por %p93, %p94
      %p97 = scmp.ne.s32.totalorder %s80, %s96
      %p98 = scmp.eq.s32.totalorder %s23, 0
      %p99 = por %p97, %p98
      %s100 = ssub.s32 %s24, %s43
      %s101 = ssub.s32 %s26, %s35
      %s102 = sor.u32 %s100, %s101
      %s103 = ssub.s32 %s25, %s39
      %s104 = sor.u32 %s102, %s103
      %p105 = scmp.eq.s32.totalorder %s104, 0
      %s107 = sadd.s32 %s106, 1
      %s108 = scalar_select %p105, %s106, %s107
      %p111 = pneg %p105
      %p112 = scmp.eq.s32.totalorder %s17, 1
      %p113 = por %p111, %p112
      %p114 = scmp.ne.s32.totalorder %s106, %s109
      %p115 = scmp.eq.s32.totalorder %s17, 0
      %p116 = por %p114, %p115
      %p117 = scmp.ne.s32.totalorder %s106, %s109
      %p118 = scmp.eq.s32.totalorder %s22, 1
      %p119 = por %p117, %p118
      %p120 = scmp.ne.s32.totalorder %s109, %s110
      %p121 = scmp.eq.s32.totalorder %s22, 0
      %p122 = por %p120, %p121
      %p123 = scmp.ne.s32.totalorder %s109, %s110
      %p124 = scmp.eq.s32.totalorder %s23, 1
      %p125 = por %p123, %p124
      %p127 = scmp.ne.s32.totalorder %s110, %s126
      %p128 = scmp.eq.s32.totalorder %s23, 0
      %p129 = por %p127, %p128
      %p130 = scmp.le.s32.totalorder 1, %s17
      %p131 = scmp.lt.s32.totalorder %s17, 3
      %p132 = pnand %p130, %p131
      %p133 = pneg %p132
      // Predicated region
      $region9: #{tpu_custom_call.1} parent=5 // pred_check
        _
      $region10: #{tpu_custom_call.1} parent=5 // pred_check_branch
        %135 = sbr.rel (%p132) target = $region12
      $region11: #{tpu_custom_call.1} parent=5 // pred_region
        %s136 = ssub.s32 %s17, 1
      $region12: #{tpu_custom_call.1} parent=5 // pred_fallthru
        _
      %p137 = scmp.lt.s32.totalorder %s17, 2
      // Predicated region
      $region13: #{tpu_custom_call.1} parent=5 // pred_check
        %p138 = pneg %p137
      $region14: #{tpu_custom_call.1} parent=5 // pred_check_branch
        %140 = sbr.rel (%p138) target = $region16
      $region15: #{tpu_custom_call.1} parent=5 // pred_region
        // Predicated region
        $region17: #{tpu_custom_call.1} parent=15 // pred_check
          %p141 = pneg %p58
        $region18: #{tpu_custom_call.1} parent=15 // pred_check_branch
          %143 = sbr.rel (%p141) target = $region20
        $region19: #{tpu_custom_call.1} parent=15 // pred_region
          %s144 = sand.u32 %s48, 1
          %s145 = scalar_lea.sflag [#allocation3], %s144
          %s146 = sand.u32 %s48, 1
          %s147 = smul.addr %s146, 8
          %s148 = scalar_lea.vmem [#allocation2], %s147
          %s149 = smul.u32 2, %s26
          %s151 = ssub.s32 128, 128
          %152 = vsyncadd %s145, %s151
          %s153 = smul.addr %s24, 2
          %s154 = sadd.s32 %s149, %s153
          %s155 = smul.addr %s154, 64
          %s156 = scalar_lea.hbm %s0, %s155
          %s157 = sshll.u32 %s148, 4
          %s158 = int_to_ptr.vmem [resolvable:$true] %s157
          %163 = dma.hbm_to_vmem [thread:$0]  %s156, 128, %s158, %s145, 64, 64, 4
        $region20: #{tpu_custom_call.1} parent=15 // pred_fallthru
          _
        // Predicated region
        $region21: #{tpu_custom_call.1} parent=15 // pred_check
          %p164 = pneg %p86
        $region22: #{tpu_custom_call.1} parent=15 // pred_check_branch
          %166 = sbr.rel (%p164) target = $region24
        $region23: #{tpu_custom_call.1} parent=15 // pred_region
          %s167 = sand.u32 %s76, 1
          %s168 = scalar_lea.sflag [#allocation6], %s167
          %s169 = sand.u32 %s76, 1
          %s170 = smul.addr %s169, 128
          %s171 = scalar_lea.vmem [#allocation5], %s170
          %s172 = smul.u32 2, %s25
          %s174 = ssub.s32 2048, 2048
          %175 = vsyncadd %s168, %s174
          %s176 = smul.addr %s24, 32
          %s177 = sadd.s32 %s172, %s176
          %s178 = smul.addr %s177, 64
          %s179 = scalar_lea.hbm %s1, %s178
          %s180 = sshll.u32 %s171, 4
          %s181 = int_to_ptr.vmem [resolvable:$true] %s180
          %186 = dma.hbm_to_vmem [thread:$0]  %s179, 2048, %s181, %s168, 128, 128, 8
        $region24: #{tpu_custom_call.1} parent=15 // pred_fallthru
          _
      $region16: #{tpu_custom_call.1} parent=5 // pred_fallthru
        _
      %p187 = scmp.le.s32.totalorder 1, %s17
      %p188 = scmp.lt.s32.totalorder %s17, 3
      %p189 = pnand %p187, %p188
      %p190 = pneg %p189
      // Predicated region
      $region25: #{tpu_custom_call.1} parent=5 // pred_check
        _
      $region26: #{tpu_custom_call.1} parent=5 // pred_check_branch
        %192 = sbr.rel (%p189) target = $region28
      $region27: #{tpu_custom_call.1} parent=5 // pred_region
        %s193 = ssub.s32 %s17, 1
        %s194 = sand.u32 %s51, 1
        %s195 = scalar_lea.sflag [#allocation3], %s194
        %s196 = sand.u32 %s51, 1
        %s197 = smul.addr %s196, 8
        %s198 = scalar_lea.vmem [#allocation2], %s197
        // Predicated region
        $region29: #{tpu_custom_call.1} parent=27 // pred_check
          %p199 = pneg %p64
        $region30: #{tpu_custom_call.1} parent=27 // pred_check_branch
          %201 = sbr.rel (%p199) target = $region32
        $region31: #{tpu_custom_call.1} parent=27 // pred_region
          %202 = dma.done %s195, 128
        $region32: #{tpu_custom_call.1} parent=27 // pred_fallthru
          _
        %s203 = sand.u32 %s79, 1
        %s204 = scalar_lea.sflag [#allocation6], %s203
        %s205 = sand.u32 %s79, 1
        %s206 = smul.addr %s205, 128
        %s207 = scalar_lea.vmem [#allocation5], %s206
        // Predicated region
        $region33: #{tpu_custom_call.1} parent=27 // pred_check
          %p208 = pneg %p92
        $region34: #{tpu_custom_call.1} parent=27 // pred_check_branch
          %210 = sbr.rel (%p208) target = $region36
        $region35: #{tpu_custom_call.1} parent=27 // pred_region
          %211 = dma.done %s204, 2048
        $region36: #{tpu_custom_call.1} parent=27 // pred_fallthru
          _
        %s212 = sand.u32 %s51, 1
        %s213 = scalar_lea.sflag [#allocation3], %s212
        %s214 = sand.u32 %s51, 1
        %s215 = smul.addr %s214, 8
        %s216 = scalar_lea.vmem [#allocation2], %s215
        %p217 = pneg %p64
        %p218 = pneg %p61
        %s219 = sand.u32 %s79, 1
        %s220 = scalar_lea.sflag [#allocation6], %s219
        %s221 = sand.u32 %s79, 1
        %s222 = smul.addr %s221, 128
        %s223 = scalar_lea.vmem [#allocation5], %s222
        %p224 = pneg %p92
        %p225 = pneg %p89
        %p226 = pneg %p122
        %p227 = pneg %p119
        %s228 = sand.u32 %s109, 1
        %s229 = scalar_lea.sflag [#allocation4], %s228
        %s230 = sand.u32 %s109, 1
        %s231 = smul.addr %s230, 32
        %s232 = scalar_lea.vmem [#allocation7], %s231
        %s233 = smul.u32 2, %s29
        %s234 = smul.u32 2, %s28
        %s235 = smul.u32 2, %s29
        %s236 = smul.u32 2, %s28
        %v238 = vld [vmem:[%s198] sm:$0xf]
        %v239 = vld [vmem:[%s198 + $0x4] sm:$0xf]
        %v240 = vld [vmem:[%s207] sm:$0xff]
        %v241 = vld [vmem:[%s207 + $0x8] sm:$0xff]
        %v242 = vld [vmem:[%s207 + $0x10] sm:$0xff]
        %v243 = vld [vmem:[%s207 + $0x18] sm:$0xff]
        %v244 = vld [vmem:[%s207 + $0x20] sm:$0xff]
        %v245 = vld [vmem:[%s207 + $0x28] sm:$0xff]
        %v246 = vld [vmem:[%s207 + $0x30] sm:$0xff]
        %v247 = vld [vmem:[%s207 + $0x38] sm:$0xff]
        %v248 = vld [vmem:[%s207 + $0x40] sm:$0xff]
        %v249 = vld [vmem:[%s207 + $0x48] sm:$0xff]
        %v250 = vld [vmem:[%s207 + $0x50] sm:$0xff]
        %v251 = vld [vmem:[%s207 + $0x58] sm:$0xff]
        %v252 = vld [vmem:[%s207 + $0x60] sm:$0xff]
        %v253 = vld [vmem:[%s207 + $0x68] sm:$0xff]
        %v254 = vld [vmem:[%s207 + $0x70] sm:$0xff]
        %v255 = vld [vmem:[%s207 + $0x78] sm:$0xff]
        %v258 = vunpack.c.l.b16 %v238
        %v259 = vunpack.c.l.b16 %v239
        %v260 = vpack.c.b16 %v259, %v258
        %v278 = vunpack.c.l.b16 %v240
        %v279 = vunpack.c.h.b16 %v240
        %v280 = vunpack.c.l.b16 %v241
        %v281 = vunpack.c.h.b16 %v241
        %v282 = vunpack.c.l.b16 %v242
        %v283 = vunpack.c.h.b16 %v242
        %v284 = vunpack.c.l.b16 %v243
        %v285 = vunpack.c.h.b16 %v243
        %v286 = vunpack.c.l.b16 %v244
        %v287 = vunpack.c.h.b16 %v244
        %v288 = vunpack.c.l.b16 %v245
        %v289 = vunpack.c.h.b16 %v245
        %v290 = vunpack.c.l.b16 %v246
        %v291 = vunpack.c.h.b16 %v246
        %v292 = vunpack.c.l.b16 %v247
        %v293 = vunpack.c.h.b16 %v247
        %v294 = vunpack.c.l.b16 %v248
        %v295 = vunpack.c.h.b16 %v248
        %v296 = vunpack.c.l.b16 %v249
        %v297 = vunpack.c.h.b16 %v249
        %v298 = vunpack.c.l.b16 %v250
        %v299 = vunpack.c.h.b16 %v250
        %v300 = vunpack.c.l.b16 %v251
        %v301 = vunpack.c.h.b16 %v251
        %v302 = vunpack.c.l.b16 %v252
        %v303 = vunpack.c.h.b16 %v252
        %v304 = vunpack.c.l.b16 %v253
        %v305 = vunpack.c.h.b16 %v253
        %v306 = vunpack.c.l.b16 %v254
        %v307 = vunpack.c.h.b16 %v254
        %v308 = vunpack.c.l.b16 %v255
        %v309 = vunpack.c.h.b16 %v255
        %v310 = vpack.c.b16 %v280, %v278
        %v311 = vpack.c.b16 %v281, %v279
        %v312 = vpack.c.b16 %v284, %v282
        %v313 = vpack.c.b16 %v285, %v283
        %v314 = vpack.c.b16 %v288, %v286
        %v315 = vpack.c.b16 %v289, %v287
        %v316 = vpack.c.b16 %v292, %v290
        %v317 = vpack.c.b16 %v293, %v291
        %v318 = vpack.c.b16 %v296, %v294
        %v319 = vpack.c.b16 %v297, %v295
        %v320 = vpack.c.b16 %v300, %v298
        %v321 = vpack.c.b16 %v301, %v299
        %v322 = vpack.c.b16 %v304, %v302
        %v323 = vpack.c.b16 %v305, %v303
        %v324 = vpack.c.b16 %v308, %v306
        %v325 = vpack.c.b16 %v309, %v307
        %342 = vmatprep.subr.bf16.mxu0 %v311
        %343 = vmatpush1.bf16.msra.mxu0 %v310
        %344 = vmatprep.subr.bf16.mxu0 %v313
        %345 = vmatpush1.bf16.msra.mxu0 %v312
        %346 = vmatprep.subr.bf16.mxu0 %v315
        %347 = vmatpush1.bf16.msra.mxu0 %v314
        %348 = vmatprep.subr.bf16.mxu0 %v317
        %349 = vmatpush1.bf16.msra.mxu0 %v316
        %350 = vmatprep.subr.bf16.mxu0 %v319
        %351 = vmatpush1.bf16.msra.mxu0 %v318
        %352 = vmatprep.subr.bf16.mxu0 %v321
        %353 = vmatpush1.bf16.msra.mxu0 %v320
        %354 = vmatprep.subr.bf16.mxu0 %v323
        %355 = vmatpush1.bf16.msra.mxu0 %v322
        %356 = vmatprep.subr.bf16.mxu0 %v325
        %357 = vmatpush1.bf16.msra.mxu0 %v324
        %358 = vmatprep.subr.bf16.mxu0 0
        %359 = vmatpush1.bf16.msra.mxu0 0
        %360 = vmatprep.subr.bf16.mxu0 0
        %361 = vmatpush1.bf16.msra.mxu0 0
        %362 = vmatprep.subr.bf16.mxu0 0
        %363 = vmatpush1.bf16.msra.mxu0 0
        %364 = vmatprep.subr.bf16.mxu0 0
        %365 = vmatpush1.bf16.msra.mxu0 0
        %366 = vmatprep.subr.bf16.mxu0 0
        %367 = vmatpush1.bf16.msra.mxu0 0
        %368 = vmatprep.subr.bf16.mxu0 0
        %369 = vmatpush1.bf16.msra.mxu0 0
        %370 = vmatprep.subr.bf16.mxu0 0
        %371 = vmatpush1.bf16.msra.mxu0 0
        %372 = vmatprep.subr.bf16.mxu0 0
        %373 = vmatpush1.bf16.msra.mxu0 0
        %374 = vmatprep.mubr.bf16.mxu0 0
        %375 = vmatmul.mubr.bf16.gmra.mrb[0].mxu0 %v260
        %v376 = vpop.f32.mrb[0].mxu0
        %v377 = vadd.f32 0.0, %v376
        %v378 = vpop.f32.mrb[0].mxu0
        %v379 = vadd.f32 0.0, %v378
        %v380 = vpop.f32.mrb[0].mxu0
        %v381 = vadd.f32 0.0, %v380
        %v382 = vpop.f32.mrb[0].mxu0
        %v383 = vadd.f32 0.0, %v382
        %384 = vdwg.mxu0
        %385 = vst [vmem:[%s232] sm:$0xff] %v377
        %386 = vst [vmem:[%s232 + $0x8] sm:$0xff] %v379
        %387 = vst [vmem:[%s232 + $0x10] sm:$0xff] %v381
        %388 = vst [vmem:[%s232 + $0x18] sm:$0xff] %v383
        %s389 = sand.u32 %s109, 1
        %s390 = scalar_lea.sflag [#allocation4], %s389
        %s391 = sand.u32 %s109, 1
        %s392 = smul.addr %s391, 32
        %s393 = scalar_lea.vmem [#allocation7], %s392
        // Predicated region
        $region37: #{tpu_custom_call.1} parent=27 // pred_check
          %p394 = pneg %p119
        $region38: #{tpu_custom_call.1} parent=27 // pred_check_branch
          %396 = sbr.rel (%p394) target = $region40
        $region39: #{tpu_custom_call.1} parent=27 // pred_region
          %s397 = smul.u32 2, %s29
          %s398 = smul.u32 2, %s28
          %s400 = ssub.s32 512, 512
          %401 = vsyncadd %s390, %s400
          %s402 = smul.addr %s397, 2
          %s403 = sadd.s32 %s398, %s402
          %s404 = smul.addr %s27, 4
          %s405 = sadd.s32 %s403, %s404
          %s406 = smul.addr %s405, 128
          %s407 = scalar_lea.hbm %s2, %s406
          %s408 = sshll.u32 %s393, 4
          %s409 = int_to_ptr.vmem [resolvable:$true] %s408
          %414 = dma.vmem_to_hbm [thread:$0]  %s409, 512, %s407, %s390, 256, 256, 16
        $region40: #{tpu_custom_call.1} parent=27 // pred_fallthru
          _
      $region28: #{tpu_custom_call.1} parent=5 // pred_fallthru
        _
      %p415 = scmp.le.s32.totalorder 2, %s17
      // Predicated region
      $region41: #{tpu_custom_call.1} parent=5 // pred_check
        %p416 = pneg %p415
      $region42: #{tpu_custom_call.1} parent=5 // pred_check_branch
        %418 = sbr.rel (%p416) target = $region44
      $region43: #{tpu_custom_call.1} parent=5 // pred_region
        %s419 = ssub.s32 %s17, 2
        // Predicated region
        $region45: #{tpu_custom_call.1} parent=43 // pred_check
          %p420 = pneg %p125
        $region46: #{tpu_custom_call.1} parent=43 // pred_check_branch
          %422 = sbr.rel (%p420) target = $region48
        $region47: #{tpu_custom_call.1} parent=43 // pred_region
          %s423 = sand.u32 %s110, 1
          %s424 = scalar_lea.sflag [#allocation4], %s423
          %s425 = sand.u32 %s110, 1
          %s426 = smul.addr %s425, 32
          %s427 = scalar_lea.vmem [#allocation7], %s426
          %428 = dma.done %s424, 512
        $region48: #{tpu_custom_call.1} parent=43 // pred_fallthru
          _
      $region44: #{tpu_custom_call.1} parent=5 // pred_fallthru
        _
    $region6: #{tpu_custom_call.1} parent=1 // loop_footer
      %s21 = sadd.s32 1, %s17
    $region7: #{tpu_custom_call.1} parent=1 // loop_footer_branch
      %16 = sbr.rel target = $region3
    $region8: #{tpu_custom_call.1} parent=1 // loop_exit
      _
    %429 = vsyncpa [#allocation3], 1
    %s430 = scalar_lea.sflag [#allocation3], 1
    %431 = vsyncpa %s430, 1
    %432 = vsyncpa [#allocation6], 1
    %s433 = scalar_lea.sflag [#allocation6], 1
    %434 = vsyncpa %s433, 1
    %435 = vsyncpa [#allocation4], 1
    %s436 = scalar_lea.sflag [#allocation4], 1
    %437 = vsyncpa %s436, 1

</llo_original>
